<compile_context>
chip_gen: v7x
topology: tpu7x:2x2x1
jax: 0.10.0
libtpu: 0.0.40
codegen_flags: <defaults>
</compile_context>

<pallas_src>
import jax
import jax.numpy as jnp
from jax.experimental import pallas as pl
from jax.experimental.pallas import tpu as pltpu


# --------------------------------------------------------------------------- #
# Kernel
# --------------------------------------------------------------------------- #
def _make_seq_linear_kernel(compute_dtype):
    """Kernel over grid (n, b, t, k): out[b, n_tile, t_tile] += W_nk @ x[b, k, t]."""

    def kernel(x_ref, w_ref, b_ref, o_ref, acc_ref):
        # x_ref: (1, k_tile, t_tile)   NCT tile (one batch row)
        # w_ref: (n_tile, k_tile)      weight tile (pre-cast if compute_dtype)
        # b_ref: (n_tile, 1) f32       bias tile
        # o_ref: (1, n_tile, t_tile)   NCT output tile
        # acc_ref: (n_tile, t_tile) f32 accumulator scratch
        k = pl.program_id(3)

        @pl.when(k == 0)
        def _init():
            acc_ref[...] = jnp.zeros_like(acc_ref)

        x = x_ref[0]
        if compute_dtype is not None and x.dtype != compute_dtype:
            # In-kernel cast: rides the VPU slot, no extra HBM pass over x.
            x = x.astype(compute_dtype)

        acc_ref[...] += jnp.dot(w_ref[...], x, preferred_element_type=jnp.float32)

        @pl.when(k == pl.num_programs(3) - 1)
        def _store():
            # f32 bias add, cast on the (lane-dense) store.
            o_ref[0] = (acc_ref[...] + b_ref[...]).astype(o_ref.dtype)

    return kernel


# --------------------------------------------------------------------------- #
# Wrapper
# --------------------------------------------------------------------------- #
def _round_down(x, m):
    return (x // m) * m


def _vmem_capacity_bytes():
    try:
        return int(pltpu.get_tpu_info().vmem_capacity_bytes)
    except Exception:
        # Conservative fallback: v7x per-core VMEM (safe everywhere).
        return 64 << 20


def _seq_linear_nct(x, weight, bias, *, t_tile=None, n_tile=None, k_tile=None,
                    compute_dtype=None):
    """x: (B, C_in, T), weight: (C_out, C_in), bias: (C_out,) -> (B, C_out, T)."""
    B, C_in, T = x.shape
    C_out = weight.shape[0]
    out_dtype = x.dtype

    # Pre-cast only the weight (amortized: fetched once per n-tile). The x cast
    # happens inside the kernel.
    if compute_dtype is not None and weight.dtype != compute_dtype:
        weight = weight.astype(compute_dtype)

    x_item = jnp.dtype(x.dtype).itemsize
    w_item = jnp.dtype(weight.dtype).itemsize
    o_item = jnp.dtype(out_dtype).itemsize

    # ---- VMEM budget ---------------------------------------------------- #
    cap = _vmem_capacity_bytes()
    budget = min(int(cap * 3 // 4), 96 << 20)   # ~48 MiB on v7x, ~96 MiB on v5e/v6e

    def footprint(n_t, t_t, k_t):
        # Double-buffered input/output tiles + single accumulator scratch.
        x_buf = k_t * t_t * x_item
        w_buf = n_t * k_t * w_item
        b_buf = n_t * 4
        o_buf = n_t * t_t * o_item
        acc_buf = n_t * t_t * 4
        return 2 * (x_buf + w_buf + b_buf + o_buf) + acc_buf

    # ---- Tile candidates -------------------------------------------------- #
    # T (lane) tile: multiple of 128 (unmasked vst), never larger than T so the
    # only partial block is the standard cdiv overhang.
    if t_tile is None:
        t_cands = []
        if T >= 128:
            t0 = min(512, _round_down(T, 128))
            t_cands.append(t0)
            for c in (256, 128):
                if c < t0:
                    t_cands.append(c)
        else:
            t_cands = [T]  # sub-128 lanes -> masked stores (see TODO above)
    else:
        t_cands = [t_tile]

    # C_out tile: prefer full C_out (x streamed exactly once); otherwise
    # 256-aligned tiles (v6e/v7x MXU), ragged C_out handled by masked writes.
    if n_tile is None:
        n_cands = [C_out]
        for c in (1024, 512, 256, 128):
            if c < C_out:
                n_cands.append(c)
    else:
        n_cands = [n_tile]

    # C_in (K) tile: prefer full C_in (weight fetched once per n-tile, no
    # accumulation overhead). Only exact divisors are allowed when tiling so
    # the contracting dim never reads an out-of-bounds overhang.
    if k_tile is None:
        k_cands = [C_in]
        for c in (2048, 1024, 512, 256, 128):
            if c < C_in and C_in % c == 0:
                k_cands.append(c)
    else:
        k_cands = [k_tile]

    sel = None
    for k_t in k_cands:                # prefer K untiled
        for n_t in n_cands:            # prefer full C_out
            for t_t in t_cands:        # prefer large T tiles
                if footprint(n_t, t_t, k_t) <= budget:
                    sel = (n_t, t_t, k_t)
                    break
            if sel is not None:
                break
        if sel is not None:
            break
    if sel is None:
        # Best effort: smallest candidates; vmem_limit raised below.
        sel = (n_cands[-1], t_cands[-1], k_cands[-1])
    n_tile, t_tile, k_tile = sel

    n_grid = pl.cdiv(C_out, n_tile)
    t_grid = pl.cdiv(T, t_tile)
    k_grid = C_in // k_tile
    grid = (n_grid, B, t_grid, k_grid)   # weight-tile axis outermost, K innermost

    bias2d = bias.reshape(C_out, 1).astype(jnp.float32)

    # ---- Cost estimate (accounts for re-reads of the chosen tiling) -------- #
    flops = 2 * B * T * C_in * C_out
    x_bytes = n_grid * B * C_in * T * x_item                      # x re-read per n-tile
    w_bytes = (1 if k_grid == 1 else B * t_grid) * C_out * C_in * w_item
    bytes_accessed = int(x_bytes + w_bytes + B * C_out * T * o_item + C_out * 4)

    needed = footprint(n_tile, t_tile, k_tile)
    vmem_limit = int(min(cap, max(needed * 5 // 4, 32 << 20)))

    out = pl.pallas_call(
        _make_seq_linear_kernel(compute_dtype),
        out_shape=jax.ShapeDtypeStruct((B, C_out, T), out_dtype),
        grid_spec=pltpu.PrefetchScalarGridSpec(
            num_scalar_prefetch=0,
            grid=grid,
            in_specs=[
                # x NCT tile: one batch row, one K tile, one T tile.
                pl.BlockSpec((1, k_tile, t_tile), lambda n, b, t, k: (b, k, t)),
                # Weight tile: constant over (b, t) -> fetched once per n-tile
                # when K is untiled (n is the outermost grid axis).
                pl.BlockSpec((n_tile, k_tile), lambda n, b, t, k: (n, k)),
                # Bias tile.
                pl.BlockSpec((n_tile, 1), lambda n, b, t, k: (n, 0)),
            ],
            out_specs=pl.BlockSpec((1, n_tile, t_tile),
                                   lambda n, b, t, k: (b, n, t)),
            scratch_shapes=[pltpu.VMEM((n_tile, t_tile), jnp.float32)],
        ),
        compiler_params=pltpu.CompilerParams(
            dimension_semantics=("parallel", "parallel", "parallel", "arbitrary"),
            vmem_limit_bytes=vmem_limit,
        ),
        cost_estimate=pl.CostEstimate(flops=flops, transcendentals=0,
                                      bytes_accessed=bytes_accessed),
    )(x, weight, bias2d)

    return out


def seq_linear_forward(x, weight, bias, *, time_dim=2, t_tile=None, n_tile=None,
                       k_tile=None, compute_dtype=None):
    """
    x:      (B, input_size, T) if time_dim == 2, else (B, T, input_size)
    weight: (output_size, input_size)   -- same convention as nn.Linear
    bias:   (output_size,)
    """
    if time_dim == 2:
        # Native NCT path — both PyTorch transposes are fused into the kernel.
        return _seq_linear_nct(x, weight, bias, t_tile=t_tile, n_tile=n_tile,
                               k_tile=k_tile, compute_dtype=compute_dtype)
    # time_dim != 2: the module applies the linear over the last dim of (B, T, C_in).
    x_nct = jnp.swapaxes(x, 1, 2)
    out = _seq_linear_nct(x_nct, weight, bias, t_tile=t_tile, n_tile=n_tile,
                          k_tile=k_tile, compute_dtype=compute_dtype)
    return jnp.swapaxes(out, 1, 2)


# --------------------------------------------------------------------------- #
# Demo / correctness check
# --------------------------------------------------------------------------- #
if __name__ == "__main__":
    key = jax.random.PRNGKey(0)
    k_x, k_w, k_b = jax.random.split(key, 3)

    # Small shapes consistent with the module; T=200 exercises the ragged-T
    # (masked partial last block) path — no pad/slice passes anymore.
    B, input_size, output_size, T = 2, 32, 64, 200

    # Deterministic init mimicking nn.Linear's U(-1/sqrt(in), 1/sqrt(in)).
    bound = 1.0 / jnp.sqrt(jnp.float32(input_size))
    weight = jax.random.uniform(k_w, (output_size, input_size),
                                jnp.float32, -bound, bound)
    bias = jax.random.uniform(k_b, (output_size,), jnp.float32, -bound, bound)

    # Input in PyTorch NCT layout: (B, input_size, T), time_dim=2.
    x = jax.random.normal(k_x, (B, input_size, T), jnp.float32)

    # Reference (same math as the PyTorch forward).
    ref = jnp.einsum("bct,oc->bot", x, weight) + bias[None, :, None]

    # f32 path.
    out = seq_linear_forward(x, weight, bias, time_dim=2)
    out = jax.block_until_ready(out)
    assert out.shape == (B, output_size, T), out.shape
    assert jnp.allclose(out, ref, atol=1e-5, rtol=1e-5)

    # bf16-compute / f32-accumulate fast path (x cast happens inside the kernel).
    out_bf16 = seq_linear_forward(x, weight, bias, time_dim=2,
                                  compute_dtype=jnp.bfloat16)
    out_bf16 = jax.block_until_ready(out_bf16)
    assert jnp.allclose(out_bf16, ref, atol=5e-2, rtol=5e-2)

    # time_dim != 2 path: input already (B, T, C_in).
    x_btc = jnp.transpose(x, (0, 2, 1))
    out_btc = seq_linear_forward(x_btc, weight, bias, time_dim=1)
    out_btc = jax.block_until_ready(out_btc)
    assert jnp.allclose(out_btc, jnp.transpose(ref, (0, 2, 1)),
                        atol=1e-5, rtol=1e-5)

    print("KERNEL_OK")
</pallas_src>

<mosaic_0001>
module attributes {stable_mosaic.version = 11 : i64} {
  func.func @kernel(%arg0: i32, %arg1: i32, %arg2: i32, %arg3: i32, %arg4: memref<1x32x128xf32, #tpu.memory_space<vmem>>, %arg5: memref<64x32xf32, #tpu.memory_space<vmem>>, %arg6: memref<64x1xf32, #tpu.memory_space<vmem>>, %arg7: memref<1x64x128xf32, #tpu.memory_space<vmem>>, %arg8: memref<64x128xf32, #tpu.memory_space<vmem>>) attributes {dimension_semantics = [#tpu.dimension_semantics<parallel>, #tpu.dimension_semantics<parallel>, #tpu.dimension_semantics<parallel>, #tpu.dimension_semantics<arbitrary>], iteration_bounds = array<i64: 1, 2, 2, 1>, scalar_prefetch = 0 : i64, scratch_operands = 1 : i64, tpu.core_type = #tpu.core_type<tc>, window_params = [{transform_indices = @transform_0, window_bounds = array<i64: 1, 32, 128>}, {transform_indices = @transform_1, window_bounds = array<i64: 64, 32>}, {transform_indices = @transform_2, window_bounds = array<i64: 64, 1>}, {transform_indices = @transform_3, window_bounds = array<i64: 1, 64, 128>}]} {
    %c0_i32 = arith.constant 0 : i32
    %0 = arith.cmpi eq, %arg3, %c0_i32 : i32
    %1 = arith.extui %0 : i1 to i32
    %c0_i32_0 = arith.constant 0 : i32
    %2 = arith.cmpi ne, %1, %c0_i32_0 : i32
    scf.if %2 {
      %cst_11 = arith.constant 0.000000e+00 : f32
      %13 = vector.broadcast %cst_11 : f32 to vector<64x128xf32>
      %c0_12 = arith.constant 0 : index
      %c0_13 = arith.constant 0 : index
      %14 = vector.load %arg8[%c0_12, %c0_13] : memref<64x128xf32, #tpu.memory_space<vmem>>, vector<64x128xf32>
      tpu.vector_store %arg8[%c0_12, %c0_13], %13 {strides = array<i32>} : memref<64x128xf32, #tpu.memory_space<vmem>>, vector<64x128xf32>,
    } else {
    }
    %c0 = arith.constant 0 : index
    %c0_1 = arith.constant 0 : index
    %c0_2 = arith.constant 0 : index
    %3 = vector.load %arg4[%c0, %c0_1, %c0_2] : memref<1x32x128xf32, #tpu.memory_space<vmem>>, vector<1x32x128xf32>
    %4 = vector.shape_cast %3 : vector<1x32x128xf32> to vector<32x128xf32>
    %c0_3 = arith.constant 0 : index
    %c0_4 = arith.constant 0 : index
    %5 = vector.load %arg8[%c0_3, %c0_4] : memref<64x128xf32, #tpu.memory_space<vmem>>, vector<64x128xf32>
    %c0_5 = arith.constant 0 : index
    %c0_6 = arith.constant 0 : index
    %6 = vector.load %arg5[%c0_5, %c0_6] : memref<64x32xf32, #tpu.memory_space<vmem>>, vector<64x32xf32>
    %cst = arith.constant dense<0.000000e+00> : vector<64x128xf32>
    %7 = tpu.matmul %6, %4, %cst {dimension_numbers = #tpu.dot_dimension_numbers<[1], [0], [0], [1], [0, 0, 1, 1], [], []>} : vector<64x32xf32>, vector<32x128xf32>, vector<64x128xf32> -> vector<64x128xf32>
    %8 = arith.addf %5, %7 : vector<64x128xf32>
    %c0_7 = arith.constant 0 : index
    %c0_8 = arith.constant 0 : index
    %9 = vector.load %arg8[%c0_7, %c0_8] : memref<64x128xf32, #tpu.memory_space<vmem>>, vector<64x128xf32>
    tpu.vector_store %arg8[%c0_7, %c0_8], %8 {strides = array<i32>} : memref<64x128xf32, #tpu.memory_space<vmem>>, vector<64x128xf32>,
    %c0_i32_9 = arith.constant 0 : i32
    %10 = arith.cmpi eq, %arg3, %c0_i32_9 : i32
    %11 = arith.extui %10 : i1 to i32
    %c0_i32_10 = arith.constant 0 : i32
    %12 = arith.cmpi ne, %11, %c0_i32_10 : i32
    scf.if %12 {
      %c0_11 = arith.constant 0 : index
      %c0_12 = arith.constant 0 : index
      %13 = vector.load %arg8[%c0_11, %c0_12] : memref<64x128xf32, #tpu.memory_space<vmem>>, vector<64x128xf32>
      %c0_13 = arith.constant 0 : index
      %c0_14 = arith.constant 0 : index
      %14 = vector.load %arg6[%c0_13, %c0_14] : memref<64x1xf32, #tpu.memory_space<vmem>>, vector<64x1xf32>
      %15 = vector.broadcast %14 : vector<64x1xf32> to vector<64x128xf32>
      %16 = arith.addf %13, %15 : vector<64x128xf32>
      %c0_15 = arith.constant 0 : index
      %c0_16 = arith.constant 0 : index
      %c0_17 = arith.constant 0 : index
      %17 = vector.load %arg7[%c0_15, %c0_16, %c0_17] : memref<1x64x128xf32, #tpu.memory_space<vmem>>, vector<1x64x128xf32>
      %18 = vector.shape_cast %17 : vector<1x64x128xf32> to vector<64x128xf32>
      %19 = vector.shape_cast %16 : vector<64x128xf32> to vector<1x64x128xf32>
      tpu.vector_store %arg7[%c0_15, %c0_16, %c0_17], %19 {strides = array<i32>} : memref<1x64x128xf32, #tpu.memory_space<vmem>>, vector<1x64x128xf32>,
    } else {
    }
    return
  }
  func.func @transform_0(%arg0: i32, %arg1: i32, %arg2: i32, %arg3: i32) -> (i32, i32, i32) {
    %c0_i32 = arith.constant 0 : i32
    return %arg1, %arg3, %arg2 : i32, i32, i32
  }
  func.func @transform_1(%arg0: i32, %arg1: i32, %arg2: i32, %arg3: i32) -> (i32, i32) {
    %c0_i32 = arith.constant 0 : i32
    return %arg0, %arg3 : i32, i32
  }
  func.func @transform_2(%arg0: i32, %arg1: i32, %arg2: i32, %arg3: i32) -> (i32, i32) {
    %c0_i32 = arith.constant 0 : i32
    %c0_i32_0 = arith.constant 0 : i32
    return %arg0, %c0_i32 : i32, i32
  }
  func.func @transform_3(%arg0: i32, %arg1: i32, %arg2: i32, %arg3: i32) -> (i32, i32, i32) {
    %c0_i32 = arith.constant 0 : i32
    return %arg1, %arg0, %arg2 : i32, i32, i32
  }
}

</mosaic_0001>

<llo_original>
// kernel: tpu_custom_call.1
$region0: #{tpu_custom_call.1}
  #allocation0 [shape = 'u32[]', space=smem, size = 0x4, offset = 0x4, fixed_abs, tag = 'smem constant byte address 0x4 - core index']
  #allocation1 [shape = 'u32[144,128]{1,0:T(1,128)}', space=vmem, size = 0x12000, scoped, tag = 'internal scratch']
  #allocation2 [shape = 'f32[64,128]{1,0:T(8,128)}', space=vmem, size = 0x8000, scoped, tag = 'scratch operand']
  %s0 = inlined_call_operand.vmem [shape: f32[2,32,200], index: 0, kind: input, shape index: {}]
  %s1 = inlined_call_operand.vmem [shape: f32[64,32], index: 1, kind: input, shape index: {}]
  %s2 = inlined_call_operand.vmem [shape: f32[64,1], index: 2, kind: input, shape index: {}]
  %s3 = inlined_call_operand.hbm [shape: f32[2,64,200], index: 3, kind: output, shape index: {}]
  %s4 = sld [smem:[#allocation0]]
  $region91: #{tpu_custom_call.1} parent=0
    _
  %s6 = ssub.s32 1, %s4
  %s7 = scalar_select 0, %s6, %s4
  $region1: #{tpu_custom_call.1} parent=0
    #allocation3 [shape = 'u8[32768]{0}', space=vmem, size = 0x8000, scoped, tag = 'input window, operand 0']
    #allocation4 [shape = 'u8[65536]{0}', space=vmem, size = 0x10000, scoped, tag = 'output window, operand 0']
    #allocation5 [shape = 's32[2]{0}', space=sflag, size = 0x8, scoped, tag = 'scoped memory for tpu_custom_call.1']
    %8 = vsyncpa [#allocation5], 0
    %s9 = scalar_lea.sflag [#allocation5], 1
    %10 = vsyncpa %s9, 0
    loop: start=0, step=1, limit=6
    $region2: #{tpu_custom_call.1} parent=1 // loop_pre_header
      _
    $region3: #{tpu_custom_call.1} parent=1 // loop_header
      %s12 = sphi 0, %s16
      %p13 = scmp.ge.s32.totalorder %s12, 6
      %s19 = sphi 0, %s45
      %s20 = sphi 0, %s41
      %s21 = sphi 0, %s37
      %s22 = sphi 0, %s33
      %s23 = sphi 0, %s19
      %s24 = sphi 0, %s20
      %s25 = sphi 0, %s21
      %s26 = sphi 0, %s22
      %s27 = sphi 0, %s23
      %s28 = sphi 0, %s24
      %s29 = sphi 0, %s25
      %s30 = sphi 0, %s26
      %s52 = sphi 0, %s54
      %s55 = sphi 0, %s52
      %s56 = sphi 0, %s55
      %s72 = sphi 0, %s56
      %s80 = sphi 0, %s82
      %s83 = sphi 0, %s80
      %s84 = sphi 0, %s83
      %s100 = sphi 0, %s84
      %s106 = sphi 0, %s108
      %s109 = sphi 0, %s106
      %s110 = sphi 0, %s109
      %s126 = sphi 0, %s110
      %s136 = sphi 0, %s138
      %s139 = sphi 0, %s136
      %s140 = sphi 0, %s139
      %s156 = sphi 0, %s140
    $region4: #{tpu_custom_call.1} parent=1 // loop_header_branch
      %15 = sbr.rel (%p13) target = $region8
    $region5: #{tpu_custom_call.1} parent=1 // loop_body
      %s17 = ssub.s32 %s12, 1
      %s18 = ssub.s32 %s12, 2
      %s31 = sadd.s32 1, %s22
      %p32 = scmp.ge.s32.totalorder %s31, 1
      %s33 = scalar_select %p32, 0, %s31
      %s34 = sadd.s32 1, %s21
      %s35 = scalar_select %p32, %s34, %s21
      %p36 = scmp.ge.s32.totalorder %s35, 2
      %s37 = scalar_select %p36, 0, %s35
      %s38 = sadd.s32 1, %s20
      %s39 = scalar_select %p36, %s38, %s20
      %p40 = scmp.ge.s32.totalorder %s39, 2
      %s41 = scalar_select %p40, 0, %s39
      %s42 = sadd.s32 1, %s19
      %s43 = scalar_select %p40, %s42, %s19
      %p44 = scmp.ge.s32.totalorder %s43, 1
      %s45 = scalar_select %p44, 0, %s43
      %s46 = ssub.s32 %s20, %s41
      %s47 = ssub.s32 %s22, %s33
      %s48 = sor.u32 %s46, %s47
      %s49 = ssub.s32 %s21, %s37
      %s50 = sor.u32 %s48, %s49
      %p51 = scmp.eq.s32.totalorder %s50, 0
      %s53 = sadd.s32 %s52, 1
      %s54 = scalar_select %p51, %s52, %s53
      %p57 = pneg %p51
      %p58 = scmp.eq.s32.totalorder %s12, 3
      %p59 = por %p57, %p58
      %p60 = scmp.ne.s32.totalorder %s52, %s55
      %p61 = scmp.eq.s32.totalorder %s12, 0
      %p62 = por %p60, %p61
      %p63 = scmp.ne.s32.totalorder %s52, %s55
      %p64 = scmp.eq.s32.totalorder %s17, 3
      %p65 = por %p63, %p64
      %p66 = scmp.ne.s32.totalorder %s55, %s56
      %p67 = scmp.eq.s32.totalorder %s17, 0
      %p68 = por %p66, %p67
      %p69 = scmp.ne.s32.totalorder %s55, %s56
      %p70 = scmp.eq.s32.totalorder %s18, 3
      %p71 = por %p69, %p70
      %p73 = scmp.ne.s32.totalorder %s56, %s72
      %p74 = scmp.eq.s32.totalorder %s18, 0
      %p75 = por %p73, %p74
      %s76 = ssub.s32 %s19, %s45
      %s77 = ssub.s32 %s22, %s33
      %s78 = sor.u32 %s76, %s77
      %p79 = scmp.eq.s32.totalorder %s78, 0
      %s81 = sadd.s32 %s80, 1
      %s82 = scalar_select %p79, %s80, %s81
      %p85 = pneg %p79
      %p86 = scmp.eq.s32.totalorder %s12, 3
      %p87 = por %p85, %p86
      %p88 = scmp.ne.s32.totalorder %s80, %s83
      %p89 = scmp.eq.s32.totalorder %s12, 0
      %p90 = por %p88, %p89
      %p91 = scmp.ne.s32.totalorder %s80, %s83
      %p92 = scmp.eq.s32.totalorder %s17, 3
      %p93 = por %p91, %p92
      %p94 = scmp.ne.s32.totalorder %s83, %s84
      %p95 = scmp.eq.s32.totalorder %s17, 0
      %p96 = por %p94, %p95
      %p97 = scmp.ne.s32.totalorder %s83, %s84
      %p98 = scmp.eq.s32.totalorder %s18, 3
      %p99 = por %p97, %p98
      %p101 = scmp.ne.s32.totalorder %s84, %s100
      %p102 = scmp.eq.s32.totalorder %s18, 0
      %p103 = por %p101, %p102
      %s104 = ssub.s32 %s19, %s45
      %p105 = scmp.eq.s32.totalorder %s104, 0
      %s107 = sadd.s32 %s106, 1
      %s108 = scalar_select %p105, %s106, %s107
      %p111 = pneg %p105
      %p112 = scmp.eq.s32.totalorder %s12, 3
      %p113 = por %p111, %p112
      %p114 = scmp.ne.s32.totalorder %s106, %s109
      %p115 = scmp.eq.s32.totalorder %s12, 0
      %p116 = por %p114, %p115
      %p117 = scmp.ne.s32.totalorder %s106, %s109
      %p118 = scmp.eq.s32.totalorder %s17, 3
      %p119 = por %p117, %p118
      %p120 = scmp.ne.s32.totalorder %s109, %s110
      %p121 = scmp.eq.s32.totalorder %s17, 0
      %p122 = por %p120, %p121
      %p123 = scmp.ne.s32.totalorder %s109, %s110
      %p124 = scmp.eq.s32.totalorder %s18, 3
      %p125 = por %p123, %p124
      %p127 = scmp.ne.s32.totalorder %s110, %s126
      %p128 = scmp.eq.s32.totalorder %s18, 0
      %p129 = por %p127, %p128
      %s130 = ssub.s32 %s20, %s41
      %s131 = ssub.s32 %s19, %s45
      %s132 = sor.u32 %s130, %s131
      %s133 = ssub.s32 %s21, %s37
      %s134 = sor.u32 %s132, %s133
      %p135 = scmp.eq.s32.totalorder %s134, 0
      %s137 = sadd.s32 %s136, 1
      %s138 = scalar_select %p135, %s136, %s137
      %p141 = pneg %p135
      %p142 = scmp.eq.s32.totalorder %s12, 3
      %p143 = por %p141, %p142
      %p144 = scmp.ne.s32.totalorder %s136, %s139
      %p145 = scmp.eq.s32.totalorder %s12, 0
      %p146 = por %p144, %p145
      %p147 = scmp.ne.s32.totalorder %s136, %s139
      %p148 = scmp.eq.s32.totalorder %s17, 3
      %p149 = por %p147, %p148
      %p150 = scmp.ne.s32.totalorder %s139, %s140
      %p151 = scmp.eq.s32.totalorder %s17, 0
      %p152 = por %p150, %p151
      %p153 = scmp.ne.s32.totalorder %s139, %s140
      %p154 = scmp.eq.s32.totalorder %s18, 3
      %p155 = por %p153, %p154
      %p157 = scmp.ne.s32.totalorder %s140, %s156
      %p158 = scmp.eq.s32.totalorder %s18, 0
      %p159 = por %p157, %p158
      %p160 = scmp.le.s32.totalorder 1, %s12
      %p161 = scmp.lt.s32.totalorder %s12, 5
      %p162 = pnand %p160, %p161
      %p163 = pneg %p162
      // Predicated region
      $region9: #{tpu_custom_call.1} parent=5 // pred_check
        _
      $region10: #{tpu_custom_call.1} parent=5 // pred_check_branch
        %165 = sbr.rel (%p162) target = $region12
      $region11: #{tpu_custom_call.1} parent=5 // pred_region
        %s166 = ssub.s32 %s12, 1
        // Predicated region
        $region13: #{tpu_custom_call.1} parent=11 // pred_check
          %p167 = pneg %p96
        $region14: #{tpu_custom_call.1} parent=11 // pred_check_branch
          %169 = sbr.rel (%p167) target = $region16
        $region15: #{tpu_custom_call.1} parent=11 // pred_region
          %s170 = smul.u32 8, %s23
          %p171 = scmp.lt.s32.totalorder %s170, 7
          %s172 = scalar_select %p171, %s170, 7
          %p173 = scmp.lt.s32.totalorder %s26, 0
          %s174 = scalar_select %p173, %s26, 0
          %s175 = sadd.s32 %s174, %s172
          %s176 = smul.addr %s175, 8
          %s177 = scalar_lea.vmem %s1, %s176
          %s178 = smul.u32 8, %s23
        $region16: #{tpu_custom_call.1} parent=11 // pred_fallthru
          _
        // Predicated region
        $region17: #{tpu_custom_call.1} parent=11 // pred_check
          %p179 = pneg %p122
        $region18: #{tpu_custom_call.1} parent=11 // pred_check_branch
          %181 = sbr.rel (%p179) target = $region20
        $region19: #{tpu_custom_call.1} parent=11 // pred_region
          %s182 = smul.u32 8, %s23
          %p183 = scmp.lt.s32.totalorder %s182, 7
          %s184 = scalar_select %p183, %s182, 7
          %s185 = smul.addr %s184, 8
          %s186 = scalar_lea.vmem %s2, %s185
          %s187 = smul.u32 8, %s23
        $region20: #{tpu_custom_call.1} parent=11 // pred_fallthru
          _
      $region12: #{tpu_custom_call.1} parent=5 // pred_fallthru
        _
      %p188 = scmp.lt.s32.totalorder %s12, 4
      // Predicated region
      $region21: #{tpu_custom_call.1} parent=5 // pred_check
        %p189 = pneg %p188
      $region22: #{tpu_custom_call.1} parent=5 // pred_check_branch
        %191 = sbr.rel (%p189) target = $region24
      $region23: #{tpu_custom_call.1} parent=5 // pred_region
        // Predicated region
        $region25: #{tpu_custom_call.1} parent=23 // pred_check
          %p192 = pneg %p62
        $region26: #{tpu_custom_call.1} parent=23 // pred_check_branch
          %194 = sbr.rel (%p192) target = $region28
        $region27: #{tpu_custom_call.1} parent=23 // pred_region
          %s195 = sand.u32 %s52, 1
          %s196 = sand.u32 %s52, 1
          %s197 = smul.addr %s196, 32
          %s198 = scalar_lea.vmem [#allocation3], %s197
          %s199 = smul.u32 4, %s22
          %s200 = smul.addr %s199, 2
          %s201 = sadd.s32 %s21, %s200
          %s202 = smul.addr %s20, 8
          %s203 = sadd.s32 %s201, %s202
          %s204 = smul.addr %s203, 8
          %s205 = scalar_lea.vmem %s0, %s204
          // Predicated region
          $region29: #{tpu_custom_call.1} parent=27 // pred_check
            _
          $region30: #{tpu_custom_call.1} parent=27 // pred_check_branch
            %207 = sbr.rel (0) target = $region32
          $region31: #{tpu_custom_call.1} parent=27 // pred_region
            // Predicated region
            $region33: #{tpu_custom_call.1} parent=31 // pred_check
              _
            $region34: #{tpu_custom_call.1} parent=31 // pred_check_branch
              %209 = sbr.rel (0) target = $region36
            $region35: #{tpu_custom_call.1} parent=31 // pred_region
              // Predicated region
              $region48: #{tpu_custom_call.1} parent=35 // pred_check
                _
              $region49: #{tpu_custom_call.1} parent=35 // pred_check_branch
                %230 = sbr.rel (0) target = $region51
              $region50: #{tpu_custom_call.1} parent=35 // pred_region
                loop: start=0, step=1, limit=1
                $region52: #{tpu_custom_call.1} parent=50 // loop_pre_header
                  _
                $region53: #{tpu_custom_call.1} parent=50 // loop_header
                  %s232 = sphi 0, %s236
                  %p233 = scmp.ge.s32.totalorder %s232, 1
                  %s237 = sphi %s205, %s205
                  %s238 = sphi %s198, %s198
                $region54: #{tpu_custom_call.1} parent=50 // loop_header_branch
                  %235 = sbr.rel (%p233) target = $region58
                $region55: #{tpu_custom_call.1} parent=50 // loop_body
                  %v239 = vld [vmem:[%s237] sm:$0xff]
                  %240 = vst [vmem:[%s238] sm:$0xff] %v239
                  %v241 = vld [vmem:[%s237 + $0x10] sm:$0xff]
                  %242 = vst [vmem:[%s238 + $0x8] sm:$0xff] %v241
                  %v243 = vld [vmem:[%s237 + $0x20] sm:$0xff]
                  %244 = vst [vmem:[%s238 + $0x10] sm:$0xff] %v243
                  %v245 = vld [vmem:[%s237 + $0x30] sm:$0xff]
                  %246 = vst [vmem:[%s238 + $0x18] sm:$0xff] %v245
                $region56: #{tpu_custom_call.1} parent=50 // loop_footer
                  %s236 = sadd.s32 1, %s232
                $region57: #{tpu_custom_call.1} parent=50 // loop_footer_branch
                  %231 = sbr.rel target = $region53
                $region58: #{tpu_custom_call.1} parent=50 // loop_exit
                  _
              $region51: #{tpu_custom_call.1} parent=35 // pred_fallthru
                _
              // Predicated region
              $region59: #{tpu_custom_call.1} parent=35 // pred_check
                _
              $region60: #{tpu_custom_call.1} parent=35 // pred_check_branch
                %248 = sbr.rel target = $region62
              $region61: #{tpu_custom_call.1} parent=35 // pred_region
                _
              $region62: #{tpu_custom_call.1} parent=35 // pred_fallthru
                _
            $region36: #{tpu_custom_call.1} parent=31 // pred_fallthru
              _
            // Predicated region
            $region37: #{tpu_custom_call.1} parent=31 // pred_check
              _
            $region38: #{tpu_custom_call.1} parent=31 // pred_check_branch
              %211 = sbr.rel target = $region40
            $region39: #{tpu_custom_call.1} parent=31 // pred_region
              loop: start=0, step=1, limit=1
              $region41: #{tpu_custom_call.1} parent=39 // loop_pre_header
                _
              $region42: #{tpu_custom_call.1} parent=39 // loop_header
                %s214 = sphi 0, %s218
                %p215 = scmp.ge.s32.totalorder %s214, 1
                %s219 = sphi %s205, %s205
                %s220 = sphi %s198, %s198
              $region43: #{tpu_custom_call.1} parent=39 // loop_header_branch
                %217 = sbr.rel (%p215) target = $region47
              $region44: #{tpu_custom_call.1} parent=39 // loop_body
                %v221 = vld [vmem:[%s219] sm:$0xff]
                %222 = vst [vmem:[%s220] sm:$0xff] %v221
                %v223 = vld [vmem:[%s219 + $0x10] sm:$0xff]
                %224 = vst [vmem:[%s220 + $0x8] sm:$0xff] %v223
                %v225 = vld [vmem:[%s219 + $0x20] sm:$0xff]
                %226 = vst [vmem:[%s220 + $0x10] sm:$0xff] %v225
                %v227 = vld [vmem:[%s219 + $0x30] sm:$0xff]
                %228 = vst [vmem:[%s220 + $0x18] sm:$0xff] %v227
              $region45: #{tpu_custom_call.1} parent=39 // loop_footer
                %s218 = sadd.s32 1, %s214
              $region46: #{tpu_custom_call.1} parent=39 // loop_footer_branch
                %213 = sbr.rel target = $region42
              $region47: #{tpu_custom_call.1} parent=39 // loop_exit
                _
            $region40: #{tpu_custom_call.1} parent=31 // pred_fallthru
              _
          $region32: #{tpu_custom_call.1} parent=27 // pred_fallthru
            _
          %249 = vnop
        $region28: #{tpu_custom_call.1} parent=23 // pred_fallthru
          _
      $region24: #{tpu_custom_call.1} parent=5 // pred_fallthru
        _
      %p250 = scmp.le.s32.totalorder 1, %s12
      %p251 = scmp.lt.s32.totalorder %s12, 5
      %p252 = pnand %p250, %p251
      %p253 = pneg %p252
      // Predicated region
      $region63: #{tpu_custom_call.1} parent=5 // pred_check
        _
      $region64: #{tpu_custom_call.1} parent=5 // pred_check_branch
        %255 = sbr.rel (%p252) target = $region66
      $region65: #{tpu_custom_call.1} parent=5 // pred_region
        %s256 = ssub.s32 %s12, 1
        %s257 = sand.u32 %s55, 1
        %s258 = sand.u32 %s55, 1
        %s259 = smul.addr %s258, 32
        %s260 = scalar_lea.vmem [#allocation3], %s259
        // Predicated region
        $region67: #{tpu_custom_call.1} parent=65 // pred_check
          %p261 = pneg %p68
        $region68: #{tpu_custom_call.1} parent=65 // pred_check_branch
          %263 = sbr.rel (%p261) target = $region70
        $region69: #{tpu_custom_call.1} parent=65 // pred_region
          _
        $region70: #{tpu_custom_call.1} parent=65 // pred_fallthru
          _
        %s264 = sand.u32 %s55, 1
        %s265 = sand.u32 %s55, 1
        %s266 = smul.addr %s265, 32
        %s267 = scalar_lea.vmem [#allocation3], %s266
        %p268 = pneg %p68
        %p269 = pneg %p65
        %s270 = smul.u32 8, %s23
        %p271 = scmp.lt.s32.totalorder %s270, 7
        %s272 = scalar_select %p271, %s270, 7
        %p273 = scmp.lt.s32.totalorder %s26, 0
        %s274 = scalar_select %p273, %s26, 0
        %s275 = sadd.s32 %s274, %s272
        %s276 = smul.addr %s275, 8
        %s277 = scalar_lea.vmem %s1, %s276
        %p278 = pneg %p96
        %p279 = pneg %p93
        %s280 = smul.u32 8, %s23
        %p281 = scmp.lt.s32.totalorder %s280, 7
        %s282 = scalar_select %p281, %s280, 7
        %s283 = smul.addr %s282, 8
        %s284 = scalar_lea.vmem %s2, %s283
        %p285 = pneg %p122
        %p286 = pneg %p119
        %p287 = pneg %p152
        %p288 = pneg %p149
        %s289 = sand.u32 %s139, 1
        %s290 = scalar_lea.sflag [#allocation5], %s289
        %s291 = sand.u32 %s139, 1
        %s292 = smul.addr %s291, 64
        %s293 = scalar_lea.vmem [#allocation4], %s292
        %s294 = smul.u32 4, %s26
        %s295 = smul.u32 8, %s23
        %p296 = scmp.lt.s32.totalorder %s295, 7
        %s297 = scalar_select %p296, %s295, 7
        %p298 = scmp.lt.s32.totalorder %s26, 0
        %s299 = scalar_select %p298, %s26, 0
        %s300 = sadd.s32 %s299, %s297
        %s301 = smul.addr %s300, 8
        %s302 = scalar_lea.vmem %s1, %s301
        %s303 = smul.u32 8, %s23
        %s304 = smul.u32 8, %s23
        %p305 = scmp.lt.s32.totalorder %s304, 7
        %s306 = scalar_select %p305, %s304, 7
        %s307 = smul.addr %s306, 8
        %s308 = scalar_lea.vmem %s2, %s307
        %s309 = smul.u32 8, %s23
        %s310 = smul.u32 8, %s23
        %p311 = scmp.eq.s32.totalorder %s26, 0
        // Predicated region
        $region71: #{tpu_custom_call.1} parent=65 // pred_check
          %p312 = pneg %p311
        $region72: #{tpu_custom_call.1} parent=65 // pred_check_branch
          %314 = sbr.rel (%p312) target = $region74
        $region73: #{tpu_custom_call.1} parent=65 // pred_region
          %315 = vst [vmem:[#allocation2] sm:$0xff] 0.0
          %316 = vst [vmem:[#allocation2 + $0x8] sm:$0xff] 0.0
          %317 = vst [vmem:[#allocation2 + $0x10] sm:$0xff] 0.0
          %318 = vst [vmem:[#allocation2 + $0x18] sm:$0xff] 0.0
          %319 = vst [vmem:[#allocation2 + $0x20] sm:$0xff] 0.0
          %320 = vst [vmem:[#allocation2 + $0x28] sm:$0xff] 0.0
          %321 = vst [vmem:[#allocation2 + $0x30] sm:$0xff] 0.0
          %322 = vst [vmem:[#allocation2 + $0x38] sm:$0xff] 0.0
        $region74: #{tpu_custom_call.1} parent=65 // pred_fallthru
          _
        %v323 = vld [vmem:[%s260] sm:$0xff]
        %v324 = vld [vmem:[%s260 + $0x8] sm:$0xff]
        %v325 = vld [vmem:[%s260 + $0x10] sm:$0xff]
        %v326 = vld [vmem:[%s260 + $0x18] sm:$0xff]
        %v327 = vld [vmem:[#allocation2] sm:$0xff]
        %v328 = vld [vmem:[#allocation2 + $0x8] sm:$0xff]
        %v329 = vld [vmem:[#allocation2 + $0x10] sm:$0xff]
        %v330 = vld [vmem:[#allocation2 + $0x18] sm:$0xff]
        %v331 = vld [vmem:[#allocation2 + $0x20] sm:$0xff]
        %v332 = vld [vmem:[#allocation2 + $0x28] sm:$0xff]
        %v333 = vld [vmem:[#allocation2 + $0x30] sm:$0xff]
        %v334 = vld [vmem:[#allocation2 + $0x38] sm:$0xff]
        %v335 = vld [vmem:[%s302] sm:$0xff]
        %v336 = vld [vmem:[%s302 + $0x8] sm:$0xff]
        %v337 = vld [vmem:[%s302 + $0x10] sm:$0xff]
        %v338 = vld [vmem:[%s302 + $0x18] sm:$0xff]
        %v339 = vld [vmem:[%s302 + $0x20] sm:$0xff]
        %v340 = vld [vmem:[%s302 + $0x28] sm:$0xff]
        %v341 = vld [vmem:[%s302 + $0x30] sm:$0xff]
        %v342 = vld [vmem:[%s302 + $0x38] sm:$0xff]
        %vm343 = vcmask 261120
        %v345 = vsel %vm343, %v335, 0
        %v348 = vsel %vm343, %v336, 0
        %v351 = vsel %vm343, %v337, 0
        %v354 = vsel %vm343, %v338, 0
        %v357 = vsel %vm343, %v339, 0
        %v360 = vsel %vm343, %v340, 0
        %v363 = vsel %vm343, %v341, 0
        %v366 = vsel %vm343, %v342, 0
        %368 = vmatprep.subr.mxu0 0.0
        %369 = vmatpush1.msra.mxu0 %v323
        %370 = vmatprep.subr.mxu0 0.0
        %371 = vmatpush1.msra.mxu0 %v324
        %372 = vmatprep.subr.mxu0 0.0
        %373 = vmatpush1.msra.mxu0 %v325
        %374 = vmatprep.subr.mxu0 0.0
        %375 = vmatpush1.msra.mxu0 %v326
        %376 = vmatprep.subr.mxu0 0.0
        %377 = vmatpush1.msra.mxu0 0.0
        %378 = vmatprep.subr.mxu0 0.0
        %379 = vmatpush1.msra.mxu0 0.0
        %380 = vmatprep.subr.mxu0 0.0
        %381 = vmatpush1.msra.mxu0 0.0
        %382 = vmatprep.subr.mxu0 0.0
        %383 = vmatpush1.msra.mxu0 0.0
        %384 = vmatprep.subr.mxu0 0.0
        %385 = vmatpush1.msra.mxu0 0.0
        %386 = vmatprep.subr.mxu0 0.0
        %387 = vmatpush1.msra.mxu0 0.0
        %388 = vmatprep.subr.mxu0 0.0
        %389 = vmatpush1.msra.mxu0 0.0
        %390 = vmatprep.subr.mxu0 0.0
        %391 = vmatpush1.msra.mxu0 0.0
        %392 = vmatprep.subr.mxu0 0.0
        %393 = vmatpush1.msra.mxu0 0.0
        %394 = vmatprep.subr.mxu0 0.0
        %395 = vmatpush1.msra.mxu0 0.0
        %396 = vmatprep.subr.mxu0 0.0
        %397 = vmatpush1.msra.mxu0 0.0
        %398 = vmatprep.subr.mxu0 0.0
        %399 = vmatpush1.msra.mxu0 0.0
        %400 = vmatprep.subr.mxu0 0.0
        %401 = vmatpush1.msra.mxu0 0.0
        %402 = vmatprep.subr.mxu0 0.0
        %403 = vmatpush1.msra.mxu0 0.0
        %404 = vmatprep.subr.mxu0 0.0
        %405 = vmatpush1.msra.mxu0 0.0
        %406 = vmatprep.subr.mxu0 0.0
        %407 = vmatpush1.msra.mxu0 0.0
        %408 = vmatprep.subr.mxu0 0.0
        %409 = vmatpush1.msra.mxu0 0.0
        %410 = vmatprep.subr.mxu0 0.0
        %411 = vmatpush1.msra.mxu0 0.0
        %412 = vmatprep.subr.mxu0 0.0
        %413 = vmatpush1.msra.mxu0 0.0
        %414 = vmatprep.subr.mxu0 0.0
        %415 = vmatpush1.msra.mxu0 0.0
        %416 = vmatprep.subr.mxu0 0.0
        %417 = vmatpush1.msra.mxu0 0.0
        %418 = vmatprep.subr.mxu0 0.0
        %419 = vmatpush1.msra.mxu0 0.0
        %420 = vmatprep.subr.mxu0 0.0
        %421 = vmatpush1.msra.mxu0 0.0
        %422 = vmatprep.subr.mxu0 0.0
        %423 = vmatpush1.msra.mxu0 0.0
        %424 = vmatprep.subr.mxu0 0.0
        %425 = vmatpush1.msra.mxu0 0.0
        %426 = vmatprep.subr.mxu0 0.0
        %427 = vmatpush1.msra.mxu0 0.0
        %428 = vmatprep.subr.mxu0 0.0
        %429 = vmatpush1.msra.mxu0 0.0
        %430 = vmatprep.subr.mxu0 0.0
        %431 = vmatpush1.msra.mxu0 0.0
        %432 = vmatprep.mubr.f32.mxu0 0.0
        %433 = vmatmul.mubr.f32.gmra.mrb[0].mxu0 %v345
        %v434 = vpop.f32.mrb[0].mxu0
        %v435 = vadd.f32 0.0, %v434
        %v436 = vpop.f32.mrb[0].mxu0
        %437 = vmatprep.mubr.f32.mxu0 0.0
        %438 = vmatmul.mubr.f32.gmra.mrb[0].mxu0 %v348
        %v439 = vpop.f32.mrb[0].mxu0
        %v440 = vadd.f32 0.0, %v439
        %v441 = vpop.f32.mrb[0].mxu0
        %442 = vmatprep.mubr.f32.mxu0 0.0
        %443 = vmatmul.mubr.f32.gmra.mrb[0].mxu0 %v351
        %v444 = vpop.f32.mrb[0].mxu0
        %v445 = vadd.f32 0.0, %v444
        %v446 = vpop.f32.mrb[0].mxu0
        %447 = vmatprep.mubr.f32.mxu0 0.0
        %448 = vmatmul.mubr.f32.gmra.mrb[0].mxu0 %v354
        %v449 = vpop.f32.mrb[0].mxu0
        %v450 = vadd.f32 0.0, %v449
        %v451 = vpop.f32.mrb[0].mxu0
        %452 = vmatprep.mubr.f32.mxu0 0.0
        %453 = vmatmul.mubr.f32.gmra.mrb[0].mxu0 %v357
        %v454 = vpop.f32.mrb[0].mxu0
        %v455 = vadd.f32 0.0, %v454
        %v456 = vpop.f32.mrb[0].mxu0
        %457 = vmatprep.mubr.f32.mxu0 0.0
        %458 = vmatmul.mubr.f32.gmra.mrb[0].mxu0 %v360
        %v459 = vpop.f32.mrb[0].mxu0
        %v460 = vadd.f32 0.0, %v459
        %v461 = vpop.f32.mrb[0].mxu0
        %462 = vmatprep.mubr.f32.mxu0 0.0
        %463 = vmatmul.mubr.f32.gmra.mrb[0].mxu0 %v363
        %v464 = vpop.f32.mrb[0].mxu0
        %v465 = vadd.f32 0.0, %v464
        %v466 = vpop.f32.mrb[0].mxu0
        %467 = vmatprep.mubr.f32.mxu0 0.0
        %468 = vmatmul.mubr.f32.gmra.mrb[0].mxu0 %v366
        %v469 = vpop.f32.mrb[0].mxu0
        %v470 = vadd.f32 0.0, %v469
        %v471 = vpop.f32.mrb[0].mxu0
        %472 = vdwg.mxu0
        %v473 = vadd.f32 %v327, %v435
        %v474 = vadd.f32 %v328, %v440
        %v475 = vadd.f32 %v329, %v445
        %v476 = vadd.f32 %v330, %v450
        %v477 = vadd.f32 %v331, %v455
        %v478 = vadd.f32 %v332, %v460
        %v479 = vadd.f32 %v333, %v465
        %v480 = vadd.f32 %v334, %v470
        %481 = vst [vmem:[#allocation2] sm:$0xff] %v473
        %482 = vst [vmem:[#allocation2 + $0x8] sm:$0xff] %v474
        %483 = vst [vmem:[#allocation2 + $0x10] sm:$0xff] %v475
        %484 = vst [vmem:[#allocation2 + $0x18] sm:$0xff] %v476
        %485 = vst [vmem:[#allocation2 + $0x20] sm:$0xff] %v477
        %486 = vst [vmem:[#allocation2 + $0x28] sm:$0xff] %v478
        %487 = vst [vmem:[#allocation2 + $0x30] sm:$0xff] %v479
        %488 = vst [vmem:[#allocation2 + $0x38] sm:$0xff] %v480
        // Predicated region
        $region75: #{tpu_custom_call.1} parent=65 // pred_check
          %p489 = pneg %p311
        $region76: #{tpu_custom_call.1} parent=65 // pred_check_branch
          %491 = sbr.rel (%p489) target = $region78
        $region77: #{tpu_custom_call.1} parent=65 // pred_region
          %v492 = vld [vmem:[#allocation2] sm:$0xff]
          %v493 = vld [vmem:[#allocation2 + $0x8] sm:$0xff]
          %v494 = vld [vmem:[#allocation2 + $0x10] sm:$0xff]
          %v495 = vld [vmem:[#allocation2 + $0x18] sm:$0xff]
          %v496 = vld [vmem:[#allocation2 + $0x20] sm:$0xff]
          %v497 = vld [vmem:[#allocation2 + $0x28] sm:$0xff]
          %v498 = vld [vmem:[#allocation2 + $0x30] sm:$0xff]
          %v499 = vld [vmem:[#allocation2 + $0x38] sm:$0xff]
          %v500 = vld [vmem:[%s308] sm:$0xff]
          %v501 = vld [vmem:[%s308 + $0x8] sm:$0xff]
          %v502 = vld [vmem:[%s308 + $0x10] sm:$0xff]
          %v503 = vld [vmem:[%s308 + $0x18] sm:$0xff]
          %v504 = vld [vmem:[%s308 + $0x20] sm:$0xff]
          %v505 = vld [vmem:[%s308 + $0x28] sm:$0xff]
          %v506 = vld [vmem:[%s308 + $0x30] sm:$0xff]
          %v507 = vld [vmem:[%s308 + $0x38] sm:$0xff]
          %509 = vset.pattern.permute.xlu0 0
          %510 = vperm.xlu0 %509, %v500
          %v511 = vpop.permute.xlu0 %510
          %514 = vset.pattern.permute.xlu0 0
          %515 = vperm.xlu0 %514, %v501
          %v516 = vpop.permute.xlu0 %515
          %519 = vset.pattern.permute.xlu0 0
          %520 = vperm.xlu0 %519, %v502
          %v521 = vpop.permute.xlu0 %520
          %524 = vset.pattern.permute.xlu0 0
          %525 = vperm.xlu0 %524, %v503
          %v526 = vpop.permute.xlu0 %525
          %529 = vset.pattern.permute.xlu0 0
          %530 = vperm.xlu0 %529, %v504
          %v531 = vpop.permute.xlu0 %530
          %534 = vset.pattern.permute.xlu0 0
          %535 = vperm.xlu0 %534, %v505
          %v536 = vpop.permute.xlu0 %535
          %539 = vset.pattern.permute.xlu0 0
          %540 = vperm.xlu0 %539, %v506
          %v541 = vpop.permute.xlu0 %540
          %544 = vset.pattern.permute.xlu0 0
          %545 = vperm.xlu0 %544, %v507
          %v546 = vpop.permute.xlu0 %545
          %v548 = vadd.f32 %v492, %v511
          %v549 = vadd.f32 %v493, %v516
          %v550 = vadd.f32 %v494, %v521
          %v551 = vadd.f32 %v495, %v526
          %v552 = vadd.f32 %v496, %v531
          %v553 = vadd.f32 %v497, %v536
          %v554 = vadd.f32 %v498, %v541
          %v555 = vadd.f32 %v499, %v546
          %556 = vst [vmem:[%s293] sm:$0xff] %v548
          %557 = vst [vmem:[%s293 + $0x8] sm:$0xff] %v549
          %558 = vst [vmem:[%s293 + $0x10] sm:$0xff] %v550
          %559 = vst [vmem:[%s293 + $0x18] sm:$0xff] %v551
          %560 = vst [vmem:[%s293 + $0x20] sm:$0xff] %v552
          %561 = vst [vmem:[%s293 + $0x28] sm:$0xff] %v553
          %562 = vst [vmem:[%s293 + $0x30] sm:$0xff] %v554
          %563 = vst [vmem:[%s293 + $0x38] sm:$0xff] %v555
        $region78: #{tpu_custom_call.1} parent=65 // pred_fallthru
          _
        %s564 = sand.u32 %s139, 1
        %s565 = scalar_lea.sflag [#allocation5], %s564
        %s566 = sand.u32 %s139, 1
        %s567 = smul.addr %s566, 64
        %s568 = scalar_lea.vmem [#allocation4], %s567
        // Predicated region
        $region79: #{tpu_custom_call.1} parent=65 // pred_check
          %p569 = pneg %p149
        $region80: #{tpu_custom_call.1} parent=65 // pred_check_branch
          %571 = sbr.rel (%p569) target = $region82
        $region81: #{tpu_custom_call.1} parent=65 // pred_region
          %s572 = smul.u32 8, %s23
          %s574 = ssub.s32 1024, 1024
          %575 = vsyncadd %s565, %s574
          %s576 = smul.addr %s572, 2
          %s577 = sadd.s32 %s25, %s576
          %s578 = smul.addr %s24, 16
          %s579 = sadd.s32 %s577, %s578
          %s580 = smul.addr %s579, 128
          %s581 = scalar_lea.hbm %s3, %s580
          %s582 = sshll.u32 %s568, 4
          %s583 = int_to_ptr.vmem [resolvable:$true] %s582
          %588 = dma.vmem_to_hbm [thread:$0]  %s583, 1024, %s581, %s565, 128, 256, 8
        $region82: #{tpu_custom_call.1} parent=65 // pred_fallthru
          _
      $region66: #{tpu_custom_call.1} parent=5 // pred_fallthru
        _
      %p589 = scmp.le.s32.totalorder 2, %s12
      // Predicated region
      $region83: #{tpu_custom_call.1} parent=5 // pred_check
        %p590 = pneg %p589
      $region84: #{tpu_custom_call.1} parent=5 // pred_check_branch
        %592 = sbr.rel (%p590) target = $region86
      $region85: #{tpu_custom_call.1} parent=5 // pred_region
        %s593 = ssub.s32 %s12, 2
        // Predicated region
        $region87: #{tpu_custom_call.1} parent=85 // pred_check
          %p594 = pneg %p155
        $region88: #{tpu_custom_call.1} parent=85 // pred_check_branch
          %596 = sbr.rel (%p594) target = $region90
        $region89: #{tpu_custom_call.1} parent=85 // pred_region
          %s597 = sand.u32 %s140, 1
          %s598 = scalar_lea.sflag [#allocation5], %s597
          %s599 = sand.u32 %s140, 1
          %s600 = smul.addr %s599, 64
          %s601 = scalar_lea.vmem [#allocation4], %s600
          %602 = dma.done %s598, 1024
        $region90: #{tpu_custom_call.1} parent=85 // pred_fallthru
          _
      $region86: #{tpu_custom_call.1} parent=5 // pred_fallthru
        _
    $region6: #{tpu_custom_call.1} parent=1 // loop_footer
      %s16 = sadd.s32 1, %s12
    $region7: #{tpu_custom_call.1} parent=1 // loop_footer_branch
      %11 = sbr.rel target = $region3
    $region8: #{tpu_custom_call.1} parent=1 // loop_exit
      _
    %603 = vsyncpa [#allocation5], 1
    %s604 = scalar_lea.sflag [#allocation5], 1
    %605 = vsyncpa %s604, 1

</llo_original>
